<compile_context>
chip_gen: v7x
topology: tpu7x:2x2x1
jax: 0.10.0
libtpu: 0.0.40
codegen_flags: <defaults>
</compile_context>

<pallas_src>
import jax
import jax.numpy as jnp
from jax.experimental import pallas as pl
from jax.experimental.pallas import tpu as pltpu


def se_kernel(x_ref, w1_ref, b1_ref, w2_ref, b2_ref, o_ref):
    # x_ref: (C, ts)   w1: (Csq, C)  b1: (Csq, 1)
    # w2:   (C, Csq)   b2: (C, 1)    o_ref: (C, ts)
    xf = x_ref[...].astype(jnp.float32)
    h1 = jnp.dot(w1_ref[...], xf, preferred_element_type=jnp.float32) + b1_ref[...]
    h1 = h1 * jax.nn.sigmoid(h1)                              # SiLU
    h2 = jnp.dot(w2_ref[...], h1, preferred_element_type=jnp.float32) + b2_ref[...]
    h2 = h2 * jax.nn.sigmoid(h2)                              # SiLU
    o_ref[...] = (h2 * xf).astype(o_ref.dtype)                # scale * x


def _pick_spatial_tile(hw, target=8192):
    """Largest multiple-of-128 divisor of hw that is <= target; else whole axis."""
    if hw % 128 != 0:
        return hw  # block equals full array dim -> satisfies tiling constraint
    best = 128
    t = 128
    while t <= min(target, hw):
        if hw % t == 0:
            best = t
        t += 128
    return best


def se_layer_pallas(x_nchw, w1t, b1, w2t, b2, *, spatial_tile=8192):
    """x_nchw: (N, C, H, W);  w1t: (Csq, C);  b1: (Csq, 1);
    w2t: (C, Csq);  b2: (C, 1).   Returns (N, C, H, W)."""
    N, C, H, W = x_nchw.shape
    Csq = w1t.shape[0]
    HW = H * W

    # Free reshape: NCHW is contiguous, so (N, C, H*W) is just a view in HBM.
    x3 = x_nchw.reshape(N, C, HW)
    ts = _pick_spatial_tile(HW, target=spatial_tile)
    grid = (N, HW // ts)

    out3 = pl.pallas_call(
        se_kernel,
        out_shape=jax.ShapeDtypeStruct((N, C, HW), x_nchw.dtype),
        grid=grid,
        in_specs=[
            # x block: (1, C, ts) with the batch dim squeezed out -> kernel sees (C, ts)
            pl.BlockSpec((None, C, ts), lambda n, j: (n, 0, j)),
            # tiny weights/biases: constant index_map -> stay resident in VMEM
            pl.BlockSpec((Csq, C), lambda n, j: (0, 0)),
            pl.BlockSpec((Csq, 1), lambda n, j: (0, 0)),
            pl.BlockSpec((C, Csq), lambda n, j: (0, 0)),
            pl.BlockSpec((C, 1), lambda n, j: (0, 0)),
        ],
        out_specs=pl.BlockSpec((None, C, ts), lambda n, j: (n, 0, j)),
        compiler_params=pltpu.CompilerParams(
            dimension_semantics=("parallel", "parallel")),
    )(x3, w1t, b1, w2t, b2)

    return out3.reshape(N, C, H, W)


def se_layer_ref(x_nchw, w1t, b1, w2t, b2):
    """Pure-JAX reference matching the PyTorch forward (pool is dead code)."""
    xf = x_nchw.astype(jnp.float32)
    h1 = jnp.einsum("sc,nchw->nshw", w1t, xf) + b1.reshape(1, -1, 1, 1)
    h1 = h1 * jax.nn.sigmoid(h1)
    h2 = jnp.einsum("cs,nshw->nchw", w2t, h1) + b2.reshape(1, -1, 1, 1)
    h2 = h2 * jax.nn.sigmoid(h2)
    return (h2 * xf).astype(x_nchw.dtype)


if __name__ == "__main__":
    # Module config: in_channel=16, expand_channel=16, reduction=4 -> squee=4
    in_channel, expand_channel, reduction = 16, 16, 4
    squee_channel = in_channel // reduction

    N, H, W = 2, 16, 16
    key = jax.random.PRNGKey(0)
    kx, k1, k2, k3, k4 = jax.random.split(key, 5)

    x = jax.random.normal(kx, (N, expand_channel, H, W), dtype=jnp.float32)

    # Conv2d(expand, squee, 1x1): weight (squee, expand, 1, 1)
    w1_conv = 0.1 * jax.random.normal(k1, (squee_channel, expand_channel, 1, 1), jnp.float32)
    b1 = 0.1 * jax.random.normal(k2, (squee_channel,), jnp.float32)
    # Conv2d(squee, expand, 1x1): weight (expand, squee, 1, 1)
    w2_conv = 0.1 * jax.random.normal(k3, (expand_channel, squee_channel, 1, 1), jnp.float32)
    b2 = 0.1 * jax.random.normal(k4, (expand_channel,), jnp.float32)

    # For the channel-contracting layout (h = W @ x_[C, HW]) the conv weights are
    # used as-is (no transposes needed):
    w1t = w1_conv[:, :, 0, 0]          # (squee, expand)
    w2t = w2_conv[:, :, 0, 0]          # (expand, squee)
    b1_col = b1.reshape(-1, 1)         # (squee, 1)
    b2_col = b2.reshape(-1, 1)         # (expand, 1)

    out = se_layer_pallas(x, w1t, b1_col, w2t, b2_col)
    out = jax.block_until_ready(out)

    ref = se_layer_ref(x, w1t, b1_col, w2t, b2_col)
    assert out.shape == x.shape
    assert jnp.allclose(out, ref, atol=1e-5, rtol=1e-5), "mismatch vs reference"

    print("KERNEL_OK")
</pallas_src>

<mosaic_0001>
module attributes {stable_mosaic.version = 11 : i64} {
  func.func @se_kernel(%arg0: i32, %arg1: i32, %arg2: memref<1x16x256xf32, #tpu.memory_space<vmem>>, %arg3: memref<4x16xf32, #tpu.memory_space<vmem>>, %arg4: memref<4x1xf32, #tpu.memory_space<vmem>>, %arg5: memref<16x4xf32, #tpu.memory_space<vmem>>, %arg6: memref<16x1xf32, #tpu.memory_space<vmem>>, %arg7: memref<1x16x256xf32, #tpu.memory_space<vmem>>) attributes {dimension_semantics = [#tpu.dimension_semantics<parallel>, #tpu.dimension_semantics<parallel>], iteration_bounds = array<i64: 2, 1>, scalar_prefetch = 0 : i64, scratch_operands = 0 : i64, tpu.core_type = #tpu.core_type<tc>, window_params = [{transform_indices = @transform_0, window_bounds = array<i64: 1, 16, 256>}, {pipeline_mode = #tpu.pipeline_mode<synchronous>, transform_indices = @transform_1, window_bounds = array<i64: 4, 16>}, {pipeline_mode = #tpu.pipeline_mode<synchronous>, transform_indices = @transform_2, window_bounds = array<i64: 4, 1>}, {pipeline_mode = #tpu.pipeline_mode<synchronous>, transform_indices = @transform_3, window_bounds = array<i64: 16, 4>}, {pipeline_mode = #tpu.pipeline_mode<synchronous>, transform_indices = @transform_4, window_bounds = array<i64: 16, 1>}, {transform_indices = @transform_5, window_bounds = array<i64: 1, 16, 256>}]} {
    %c0 = arith.constant 0 : index
    %c0_0 = arith.constant 0 : index
    %c0_1 = arith.constant 0 : index
    %0 = vector.load %arg2[%c0, %c0_0, %c0_1] : memref<1x16x256xf32, #tpu.memory_space<vmem>>, vector<1x16x256xf32>
    %1 = vector.shape_cast %0 : vector<1x16x256xf32> to vector<16x256xf32>
    %c0_2 = arith.constant 0 : index
    %c0_3 = arith.constant 0 : index
    %2 = vector.load %arg3[%c0_2, %c0_3] : memref<4x16xf32, #tpu.memory_space<vmem>>, vector<4x16xf32>
    %cst = arith.constant dense<0.000000e+00> : vector<4x256xf32>
    %3 = tpu.matmul %2, %1, %cst {dimension_numbers = #tpu.dot_dimension_numbers<[1], [0], [0], [1], [0, 0, 1, 1], [], []>} : vector<4x16xf32>, vector<16x256xf32>, vector<4x256xf32> -> vector<4x256xf32>
    %c0_4 = arith.constant 0 : index
    %c0_5 = arith.constant 0 : index
    %4 = vector.load %arg4[%c0_4, %c0_5] : memref<4x1xf32, #tpu.memory_space<vmem>>, vector<4x1xf32>
    %5 = vector.broadcast %4 : vector<4x1xf32> to vector<4x256xf32>
    %6 = arith.addf %3, %5 : vector<4x256xf32>
    %7 = arith.negf %6 : vector<4x256xf32>
    %8 = math.exp %7 : vector<4x256xf32>
    %cst_6 = arith.constant 1.000000e+00 : f32
    %9 = vector.broadcast %cst_6 : f32 to vector<4x256xf32>
    %10 = arith.addf %9, %8 : vector<4x256xf32>
    %11 = arith.divf %9, %10 : vector<4x256xf32>
    %12 = arith.mulf %6, %11 : vector<4x256xf32>
    %c0_7 = arith.constant 0 : index
    %c0_8 = arith.constant 0 : index
    %13 = vector.load %arg5[%c0_7, %c0_8] : memref<16x4xf32, #tpu.memory_space<vmem>>, vector<16x4xf32>
    %cst_9 = arith.constant dense<0.000000e+00> : vector<16x256xf32>
    %14 = tpu.matmul %13, %12, %cst_9 {dimension_numbers = #tpu.dot_dimension_numbers<[1], [0], [0], [1], [0, 0, 1, 1], [], []>} : vector<16x4xf32>, vector<4x256xf32>, vector<16x256xf32> -> vector<16x256xf32>
    %c0_10 = arith.constant 0 : index
    %c0_11 = arith.constant 0 : index
    %15 = vector.load %arg6[%c0_10, %c0_11] : memref<16x1xf32, #tpu.memory_space<vmem>>, vector<16x1xf32>
    %16 = vector.broadcast %15 : vector<16x1xf32> to vector<16x256xf32>
    %17 = arith.addf %14, %16 : vector<16x256xf32>
    %18 = arith.negf %17 : vector<16x256xf32>
    %19 = math.exp %18 : vector<16x256xf32>
    %cst_12 = arith.constant 1.000000e+00 : f32
    %20 = vector.broadcast %cst_12 : f32 to vector<16x256xf32>
    %21 = arith.addf %20, %19 : vector<16x256xf32>
    %22 = arith.divf %20, %21 : vector<16x256xf32>
    %23 = arith.mulf %17, %22 : vector<16x256xf32>
    %24 = arith.mulf %23, %1 : vector<16x256xf32>
    %c0_13 = arith.constant 0 : index
    %c0_14 = arith.constant 0 : index
    %c0_15 = arith.constant 0 : index
    %25 = vector.load %arg7[%c0_13, %c0_14, %c0_15] : memref<1x16x256xf32, #tpu.memory_space<vmem>>, vector<1x16x256xf32>
    %26 = vector.shape_cast %25 : vector<1x16x256xf32> to vector<16x256xf32>
    %27 = vector.shape_cast %24 : vector<16x256xf32> to vector<1x16x256xf32>
    tpu.vector_store %arg7[%c0_13, %c0_14, %c0_15], %27 {strides = array<i32>} : memref<1x16x256xf32, #tpu.memory_space<vmem>>, vector<1x16x256xf32>,
    return
  }
  func.func @transform_0(%arg0: i32, %arg1: i32) -> (i32, i32, i32) {
    %c0_i32 = arith.constant 0 : i32
    %c0_i32_0 = arith.constant 0 : i32
    return %arg0, %c0_i32, %arg1 : i32, i32, i32
  }
  func.func @transform_1(%arg0: i32, %arg1: i32) -> (i32, i32) {
    %c0_i32 = arith.constant 0 : i32
    %c0_i32_0 = arith.constant 0 : i32
    %c0_i32_1 = arith.constant 0 : i32
    return %c0_i32, %c0_i32_0 : i32, i32
  }
  func.func @transform_2(%arg0: i32, %arg1: i32) -> (i32, i32) {
    %c0_i32 = arith.constant 0 : i32
    %c0_i32_0 = arith.constant 0 : i32
    %c0_i32_1 = arith.constant 0 : i32
    return %c0_i32, %c0_i32_0 : i32, i32
  }
  func.func @transform_3(%arg0: i32, %arg1: i32) -> (i32, i32) {
    %c0_i32 = arith.constant 0 : i32
    %c0_i32_0 = arith.constant 0 : i32
    %c0_i32_1 = arith.constant 0 : i32
    return %c0_i32, %c0_i32_0 : i32, i32
  }
  func.func @transform_4(%arg0: i32, %arg1: i32) -> (i32, i32) {
    %c0_i32 = arith.constant 0 : i32
    %c0_i32_0 = arith.constant 0 : i32
    %c0_i32_1 = arith.constant 0 : i32
    return %c0_i32, %c0_i32_0 : i32, i32
  }
  func.func @transform_5(%arg0: i32, %arg1: i32) -> (i32, i32, i32) {
    %c0_i32 = arith.constant 0 : i32
    %c0_i32_0 = arith.constant 0 : i32
    return %arg0, %c0_i32, %arg1 : i32, i32, i32
  }
}

</mosaic_0001>

<llo_original>
// kernel: tpu_custom_call.1
$region0: #{tpu_custom_call.1}
  #allocation0 [shape = 'u32[]', space=smem, size = 0x4, offset = 0x4, fixed_abs, tag = 'smem constant byte address 0x4 - core index']
  #allocation1 [shape = 'u32[144,128]{1,0:T(1,128)}', space=vmem, size = 0x12000, scoped, tag = 'internal scratch']
  %s0 = inlined_call_operand.hbm [shape: f32[2,16,256], index: 0, kind: input, shape index: {}]
  %s1 = inlined_call_operand.vmem [shape: f32[4,16], index: 1, kind: input, shape index: {}]
  %s2 = inlined_call_operand.vmem [shape: f32[4,1], index: 2, kind: input, shape index: {}]
  %s3 = inlined_call_operand.vmem [shape: f32[16,4], index: 3, kind: input, shape index: {}]
  %s4 = inlined_call_operand.vmem [shape: f32[16,1], index: 4, kind: input, shape index: {}]
  %s5 = inlined_call_operand.hbm [shape: f32[2,16,256], index: 5, kind: output, shape index: {}]
  %s6 = sld [smem:[#allocation0]]
  $region57: #{tpu_custom_call.1} parent=0
    _
  %s8 = ssub.s32 1, %s6
  %s9 = scalar_select 0, %s8, %s6
  $region1: #{tpu_custom_call.1} parent=0
    #allocation2 [shape = 'u8[32768]{0}', space=vmem, size = 0x8000, scoped, tag = 'input window, operand 0']
    #allocation3 [shape = 's32[2]{0}', space=sflag, size = 0x8, scoped, tag = 'scoped memory for tpu_custom_call.1']
    #allocation4 [shape = 's32[2]{0}', space=sflag, size = 0x8, scoped, tag = 'scoped memory for tpu_custom_call.1']
    #allocation5 [shape = 'u8[32768]{0}', space=vmem, size = 0x8000, scoped, tag = 'output window, operand 0']
    %10 = vsyncpa [#allocation3], 0
    %s11 = scalar_lea.sflag [#allocation3], 1
    %12 = vsyncpa %s11, 0
    %13 = vsyncpa [#allocation4], 0
    %s14 = scalar_lea.sflag [#allocation4], 1
    %15 = vsyncpa %s14, 0
    loop: start=0, step=1, limit=4
    $region2: #{tpu_custom_call.1} parent=1 // loop_pre_header
      _
    $region3: #{tpu_custom_call.1} parent=1 // loop_header
      %s17 = sphi 0, %s21
      %p18 = scmp.ge.s32.totalorder %s17, 4
      %s24 = sphi 0, %s36
      %s25 = sphi 0, %s32
      %s26 = sphi 0, %s24
      %s27 = sphi 0, %s25
      %s28 = sphi 0, %s26
      %s29 = sphi 0, %s27
      %s41 = sphi 0, %s43
      %s44 = sphi 0, %s41
      %s45 = sphi 0, %s44
      %s61 = sphi 0, %s45
      %s65 = sphi 0, %s65
      %s67 = sphi 0, %s65
      %s68 = sphi 0, %s67
      %s82 = sphi 0, %s68
      %s86 = sphi 0, %s86
      %s88 = sphi 0, %s86
      %s89 = sphi 0, %s88
      %s103 = sphi 0, %s89
      %s107 = sphi 0, %s107
      %s109 = sphi 0, %s107
      %s110 = sphi 0, %s109
      %s124 = sphi 0, %s110
      %s128 = sphi 0, %s128
      %s130 = sphi 0, %s128
      %s131 = sphi 0, %s130
      %s145 = sphi 0, %s131
      %s153 = sphi 0, %s155
      %s156 = sphi 0, %s153
      %s157 = sphi 0, %s156
      %s173 = sphi 0, %s157
    $region4: #{tpu_custom_call.1} parent=1 // loop_header_branch
      %20 = sbr.rel (%p18) target = $region8
    $region5: #{tpu_custom_call.1} parent=1 // loop_body
      %s22 = ssub.s32 %s17, 1
      %s23 = ssub.s32 %s17, 2
      %s30 = sadd.s32 1, %s25
      %p31 = scmp.ge.s32.totalorder %s30, 1
      %s32 = scalar_select %p31, 0, %s30
      %s33 = sadd.s32 1, %s24
      %s34 = scalar_select %p31, %s33, %s24
      %p35 = scmp.ge.s32.totalorder %s34, 2
      %s36 = scalar_select %p35, 0, %s34
      %s37 = ssub.s32 %s24, %s36
      %s38 = ssub.s32 %s25, %s32
      %s39 = sor.u32 %s37, %s38
      %p40 = scmp.eq.s32.totalorder %s39, 0
      %s42 = sadd.s32 %s41, 1
      %s43 = scalar_select %p40, %s41, %s42
      %p46 = pneg %p40
      %p47 = scmp.eq.s32.totalorder %s17, 1
      %p48 = por %p46, %p47
      %p49 = scmp.ne.s32.totalorder %s41, %s44
      %p50 = scmp.eq.s32.totalorder %s17, 0
      %p51 = por %p49, %p50
      %p52 = scmp.ne.s32.totalorder %s41, %s44
      %p53 = scmp.eq.s32.totalorder %s22, 1
      %p54 = por %p52, %p53
      %p55 = scmp.ne.s32.totalorder %s44, %s45
      %p56 = scmp.eq.s32.totalorder %s22, 0
      %p57 = por %p55, %p56
      %p58 = scmp.ne.s32.totalorder %s44, %s45
      %p59 = scmp.eq.s32.totalorder %s23, 1
      %p60 = por %p58, %p59
      %p62 = scmp.ne.s32.totalorder %s45, %s61
      %p63 = scmp.eq.s32.totalorder %s23, 0
      %p64 = por %p62, %p63
      %s66 = sadd.s32 %s65, 1
      %p69 = scmp.eq.s32.totalorder %s17, 1
      %p70 = scmp.ne.s32.totalorder %s65, %s67
      %p71 = scmp.eq.s32.totalorder %s17, 0
      %p72 = por %p70, %p71
      %p73 = scmp.ne.s32.totalorder %s65, %s67
      %p74 = scmp.eq.s32.totalorder %s22, 1
      %p75 = por %p73, %p74
      %p76 = scmp.ne.s32.totalorder %s67, %s68
      %p77 = scmp.eq.s32.totalorder %s22, 0
      %p78 = por %p76, %p77
      %p79 = scmp.ne.s32.totalorder %s67, %s68
      %p80 = scmp.eq.s32.totalorder %s23, 1
      %p81 = por %p79, %p80
      %p83 = scmp.ne.s32.totalorder %s68, %s82
      %p84 = scmp.eq.s32.totalorder %s23, 0
      %p85 = por %p83, %p84
      %s87 = sadd.s32 %s86, 1
      %p90 = scmp.eq.s32.totalorder %s17, 1
      %p91 = scmp.ne.s32.totalorder %s86, %s88
      %p92 = scmp.eq.s32.totalorder %s17, 0
      %p93 = por %p91, %p92
      %p94 = scmp.ne.s32.totalorder %s86, %s88
      %p95 = scmp.eq.s32.totalorder %s22, 1
      %p96 = por %p94, %p95
      %p97 = scmp.ne.s32.totalorder %s88, %s89
      %p98 = scmp.eq.s32.totalorder %s22, 0
      %p99 = por %p97, %p98
      %p100 = scmp.ne.s32.totalorder %s88, %s89
      %p101 = scmp.eq.s32.totalorder %s23, 1
      %p102 = por %p100, %p101
      %p104 = scmp.ne.s32.totalorder %s89, %s103
      %p105 = scmp.eq.s32.totalorder %s23, 0
      %p106 = por %p104, %p105
      %s108 = sadd.s32 %s107, 1
      %p111 = scmp.eq.s32.totalorder %s17, 1
      %p112 = scmp.ne.s32.totalorder %s107, %s109
      %p113 = scmp.eq.s32.totalorder %s17, 0
      %p114 = por %p112, %p113
      %p115 = scmp.ne.s32.totalorder %s107, %s109
      %p116 = scmp.eq.s32.totalorder %s22, 1
      %p117 = por %p115, %p116
      %p118 = scmp.ne.s32.totalorder %s109, %s110
      %p119 = scmp.eq.s32.totalorder %s22, 0
      %p120 = por %p118, %p119
      %p121 = scmp.ne.s32.totalorder %s109, %s110
      %p122 = scmp.eq.s32.totalorder %s23, 1
      %p123 = por %p121, %p122
      %p125 = scmp.ne.s32.totalorder %s110, %s124
      %p126 = scmp.eq.s32.totalorder %s23, 0
      %p127 = por %p125, %p126
      %s129 = sadd.s32 %s128, 1
      %p132 = scmp.eq.s32.totalorder %s17, 1
      %p133 = scmp.ne.s32.totalorder %s128, %s130
      %p134 = scmp.eq.s32.totalorder %s17, 0
      %p135 = por %p133, %p134
      %p136 = scmp.ne.s32.totalorder %s128, %s130
      %p137 = scmp.eq.s32.totalorder %s22, 1
      %p138 = por %p136, %p137
      %p139 = scmp.ne.s32.totalorder %s130, %s131
      %p140 = scmp.eq.s32.totalorder %s22, 0
      %p141 = por %p139, %p140
      %p142 = scmp.ne.s32.totalorder %s130, %s131
      %p143 = scmp.eq.s32.totalorder %s23, 1
      %p144 = por %p142, %p143
      %p146 = scmp.ne.s32.totalorder %s131, %s145
      %p147 = scmp.eq.s32.totalorder %s23, 0
      %p148 = por %p146, %p147
      %s149 = ssub.s32 %s24, %s36
      %s150 = ssub.s32 %s25, %s32
      %s151 = sor.u32 %s149, %s150
      %p152 = scmp.eq.s32.totalorder %s151, 0
      %s154 = sadd.s32 %s153, 1
      %s155 = scalar_select %p152, %s153, %s154
      %p158 = pneg %p152
      %p159 = scmp.eq.s32.totalorder %s17, 1
      %p160 = por %p158, %p159
      %p161 = scmp.ne.s32.totalorder %s153, %s156
      %p162 = scmp.eq.s32.totalorder %s17, 0
      %p163 = por %p161, %p162
      %p164 = scmp.ne.s32.totalorder %s153, %s156
      %p165 = scmp.eq.s32.totalorder %s22, 1
      %p166 = por %p164, %p165
      %p167 = scmp.ne.s32.totalorder %s156, %s157
      %p168 = scmp.eq.s32.totalorder %s22, 0
      %p169 = por %p167, %p168
      %p170 = scmp.ne.s32.totalorder %s156, %s157
      %p171 = scmp.eq.s32.totalorder %s23, 1
      %p172 = por %p170, %p171
      %p174 = scmp.ne.s32.totalorder %s157, %s173
      %p175 = scmp.eq.s32.totalorder %s23, 0
      %p176 = por %p174, %p175
      %p177 = scmp.le.s32.totalorder 1, %s17
      %p178 = scmp.lt.s32.totalorder %s17, 3
      %p179 = pnand %p177, %p178
      %p180 = pneg %p179
      // Predicated region
      $region9: #{tpu_custom_call.1} parent=5 // pred_check
        _
      $region10: #{tpu_custom_call.1} parent=5 // pred_check_branch
        %182 = sbr.rel (%p179) target = $region12
      $region11: #{tpu_custom_call.1} parent=5 // pred_region
        %s183 = ssub.s32 %s17, 1
        // Predicated region
        $region13: #{tpu_custom_call.1} parent=11 // pred_check
          %p184 = pneg %p78
        $region14: #{tpu_custom_call.1} parent=11 // pred_check_branch
          %186 = sbr.rel (%p184) target = $region16
        $region15: #{tpu_custom_call.1} parent=11 // pred_region
          _
        $region16: #{tpu_custom_call.1} parent=11 // pred_fallthru
          _
        // Predicated region
        $region17: #{tpu_custom_call.1} parent=11 // pred_check
          %p187 = pneg %p99
        $region18: #{tpu_custom_call.1} parent=11 // pred_check_branch
          %189 = sbr.rel (%p187) target = $region20
        $region19: #{tpu_custom_call.1} parent=11 // pred_region
          _
        $region20: #{tpu_custom_call.1} parent=11 // pred_fallthru
          _
        // Predicated region
        $region21: #{tpu_custom_call.1} parent=11 // pred_check
          %p190 = pneg %p120
        $region22: #{tpu_custom_call.1} parent=11 // pred_check_branch
          %192 = sbr.rel (%p190) target = $region24
        $region23: #{tpu_custom_call.1} parent=11 // pred_region
          _
        $region24: #{tpu_custom_call.1} parent=11 // pred_fallthru
          _
        // Predicated region
        $region25: #{tpu_custom_call.1} parent=11 // pred_check
          %p193 = pneg %p141
        $region26: #{tpu_custom_call.1} parent=11 // pred_check_branch
          %195 = sbr.rel (%p193) target = $region28
        $region27: #{tpu_custom_call.1} parent=11 // pred_region
          _
        $region28: #{tpu_custom_call.1} parent=11 // pred_fallthru
          _
      $region12: #{tpu_custom_call.1} parent=5 // pred_fallthru
        _
      %p196 = scmp.lt.s32.totalorder %s17, 2
      // Predicated region
      $region29: #{tpu_custom_call.1} parent=5 // pred_check
        %p197 = pneg %p196
      $region30: #{tpu_custom_call.1} parent=5 // pred_check_branch
        %199 = sbr.rel (%p197) target = $region32
      $region31: #{tpu_custom_call.1} parent=5 // pred_region
        // Predicated region
        $region33: #{tpu_custom_call.1} parent=31 // pred_check
          %p200 = pneg %p51
        $region34: #{tpu_custom_call.1} parent=31 // pred_check_branch
          %202 = sbr.rel (%p200) target = $region36
        $region35: #{tpu_custom_call.1} parent=31 // pred_region
          %s203 = sand.u32 %s41, 1
          %s204 = scalar_lea.sflag [#allocation3], %s203
          %s205 = sand.u32 %s41, 1
          %s206 = smul.addr %s205, 32
          %s207 = scalar_lea.vmem [#allocation2], %s206
          %s208 = smul.u32 2, %s25
          %s210 = ssub.s32 512, 512
          %211 = vsyncadd %s204, %s210
          %s212 = smul.addr %s24, 4
          %s213 = sadd.s32 %s208, %s212
          %s214 = smul.addr %s213, 128
          %s215 = scalar_lea.hbm %s0, %s214
          %s216 = sshll.u32 %s207, 4
          %s217 = int_to_ptr.vmem [resolvable:$true] %s216
          %222 = dma.hbm_to_vmem [thread:$0]  %s215, 512, %s217, %s204, 256, 256, 16
        $region36: #{tpu_custom_call.1} parent=31 // pred_fallthru
          _
      $region32: #{tpu_custom_call.1} parent=5 // pred_fallthru
        _
      %p223 = scmp.le.s32.totalorder 1, %s17
      %p224 = scmp.lt.s32.totalorder %s17, 3
      %p225 = pnand %p223, %p224
      %p226 = pneg %p225
      // Predicated region
      $region37: #{tpu_custom_call.1} parent=5 // pred_check
        _
      $region38: #{tpu_custom_call.1} parent=5 // pred_check_branch
        %228 = sbr.rel (%p225) target = $region40
      $region39: #{tpu_custom_call.1} parent=5 // pred_region
        %s229 = ssub.s32 %s17, 1
        %s230 = sand.u32 %s44, 1
        %s231 = scalar_lea.sflag [#allocation3], %s230
        %s232 = sand.u32 %s44, 1
        %s233 = smul.addr %s232, 32
        %s234 = scalar_lea.vmem [#allocation2], %s233
        // Predicated region
        $region41: #{tpu_custom_call.1} parent=39 // pred_check
          %p235 = pneg %p57
        $region42: #{tpu_custom_call.1} parent=39 // pred_check_branch
          %237 = sbr.rel (%p235) target = $region44
        $region43: #{tpu_custom_call.1} parent=39 // pred_region
          %238 = dma.done %s231, 512
        $region44: #{tpu_custom_call.1} parent=39 // pred_fallthru
          _
        %s239 = sand.u32 %s44, 1
        %s240 = scalar_lea.sflag [#allocation3], %s239
        %s241 = sand.u32 %s44, 1
        %s242 = smul.addr %s241, 32
        %s243 = scalar_lea.vmem [#allocation2], %s242
        %p244 = pneg %p57
        %p245 = pneg %p54
        %p246 = pneg %p78
        %p247 = pneg %p75
        %p248 = pneg %p99
        %p249 = pneg %p96
        %p250 = pneg %p120
        %p251 = pneg %p117
        %p252 = pneg %p141
        %p253 = pneg %p138
        %p254 = pneg %p169
        %p255 = pneg %p166
        %s256 = sand.u32 %s156, 1
        %s257 = scalar_lea.sflag [#allocation4], %s256
        %s258 = sand.u32 %s156, 1
        %s259 = smul.addr %s258, 32
        %s260 = scalar_lea.vmem [#allocation5], %s259
        %s261 = smul.u32 2, %s27
        %s262 = smul.u32 2, %s27
        %v263 = vld [vmem:[%s234] sm:$0xff]
        %v264 = vld [vmem:[%s234 + $0x8] sm:$0xff]
        %v265 = vld [vmem:[%s234 + $0x10] sm:$0xff]
        %v266 = vld [vmem:[%s234 + $0x18] sm:$0xff]
        %v267 = vld [vmem:[%s1] sm:$0xf]
        %v268 = vld [vmem:[%s2] sm:$0xf]
        %270 = vset.pattern.permute.xlu0 0
        %271 = vperm.xlu0 %270, %v268
        %v272 = vpop.permute.xlu0 %271
        %vm274 = vcmask 130048
        %v276 = vsel %vm274, %v267, 0
        %278 = vmatprep.subr.mxu0 %v264
        %279 = vmatpush1.msra.mxu0 %v263
        %280 = vmatprep.subr.mxu0 %v266
        %281 = vmatpush1.msra.mxu0 %v265
        %282 = vmatprep.subr.mxu0 0.0
        %283 = vmatpush1.msra.mxu0 0.0
        %284 = vmatprep.subr.mxu0 0.0
        %285 = vmatpush1.msra.mxu0 0.0
        %286 = vmatprep.subr.mxu0 0.0
        %287 = vmatpush1.msra.mxu0 0.0
        %288 = vmatprep.subr.mxu0 0.0
        %289 = vmatpush1.msra.mxu0 0.0
        %290 = vmatprep.subr.mxu0 0.0
        %291 = vmatpush1.msra.mxu0 0.0
        %292 = vmatprep.subr.mxu0 0.0
        %293 = vmatpush1.msra.mxu0 0.0
        %294 = vmatprep.subr.mxu0 0.0
        %295 = vmatpush1.msra.mxu0 0.0
        %296 = vmatprep.subr.mxu0 0.0
        %297 = vmatpush1.msra.mxu0 0.0
        %298 = vmatprep.subr.mxu0 0.0
        %299 = vmatpush1.msra.mxu0 0.0
        %300 = vmatprep.subr.mxu0 0.0
        %301 = vmatpush1.msra.mxu0 0.0
        %302 = vmatprep.subr.mxu0 0.0
        %303 = vmatpush1.msra.mxu0 0.0
        %304 = vmatprep.subr.mxu0 0.0
        %305 = vmatpush1.msra.mxu0 0.0
        %306 = vmatprep.subr.mxu0 0.0
        %307 = vmatpush1.msra.mxu0 0.0
        %308 = vmatprep.subr.mxu0 0.0
        %309 = vmatpush1.msra.mxu0 0.0
        %310 = vmatprep.subr.mxu0 0.0
        %311 = vmatpush1.msra.mxu0 0.0
        %312 = vmatprep.subr.mxu0 0.0
        %313 = vmatpush1.msra.mxu0 0.0
        %314 = vmatprep.subr.mxu0 0.0
        %315 = vmatpush1.msra.mxu0 0.0
        %316 = vmatprep.subr.mxu0 0.0
        %317 = vmatpush1.msra.mxu0 0.0
        %318 = vmatprep.subr.mxu0 0.0
        %319 = vmatpush1.msra.mxu0 0.0
        %320 = vmatprep.subr.mxu0 0.0
        %321 = vmatpush1.msra.mxu0 0.0
        %322 = vmatprep.subr.mxu0 0.0
        %323 = vmatpush1.msra.mxu0 0.0
        %324 = vmatprep.subr.mxu0 0.0
        %325 = vmatpush1.msra.mxu0 0.0
        %326 = vmatprep.subr.mxu0 0.0
        %327 = vmatpush1.msra.mxu0 0.0
        %328 = vmatprep.subr.mxu0 0.0
        %329 = vmatpush1.msra.mxu0 0.0
        %330 = vmatprep.subr.mxu0 0.0
        %331 = vmatpush1.msra.mxu0 0.0
        %332 = vmatprep.subr.mxu0 0.0
        %333 = vmatpush1.msra.mxu0 0.0
        %334 = vmatprep.subr.mxu0 0.0
        %335 = vmatpush1.msra.mxu0 0.0
        %336 = vmatprep.subr.mxu0 0.0
        %337 = vmatpush1.msra.mxu0 0.0
        %338 = vmatprep.subr.mxu0 0.0
        %339 = vmatpush1.msra.mxu0 0.0
        %340 = vmatprep.subr.mxu0 0.0
        %341 = vmatpush1.msra.mxu0 0.0
        %342 = vmatprep.mubr.f32.mxu0 0.0
        %343 = vmatmul.mubr.f32.gmra.mrb[0].mxu0 %v276
        %v344 = vpop.f32.mrb[0].mxu0
        %v345 = vadd.f32 %v272, %v344
        %v346 = vpop.f32.mrb[0].mxu0
        %v347 = vadd.f32 %v272, %v346
        %348 = vdwg.mxu0
        %v349 = vxor.u32 %v345, 2147483648
        %v350 = vxor.u32 %v347, 2147483648
        %v351 = vmul.f32 %v349, 1.442695
        %v352 = vpow.pop %v351
        %v353 = vmul.f32 %v350, 1.442695
        %v354 = vpow.pop %v353
        %v355 = vadd.f32 %v352, 1.0
        %v356 = vadd.f32 %v354, 1.0
        %v357 = vrcp.pop %v355
        %v358 = vmul.f32 1.0, %v357
        %v359 = vrcp.pop %v356
        %v360 = vmul.f32 1.0, %v359
        %v361 = vmul.f32 %v345, %v358
        %v362 = vmul.f32 %v347, %v360
        %v363 = vld [vmem:[%s3] sm:$0xff]
        %v364 = vld [vmem:[%s3 + $0x8] sm:$0xff]
        %v365 = vld [vmem:[%s4] sm:$0xff]
        %v366 = vld [vmem:[%s4 + $0x8] sm:$0xff]
        %368 = vset.pattern.permute.xlu0 0
        %369 = vperm.xlu0 %368, %v365
        %v370 = vpop.permute.xlu0 %369
        %373 = vset.pattern.permute.xlu0 0
        %374 = vperm.xlu0 %373, %v366
        %v375 = vpop.permute.xlu0 %374
        %vm377 = vcmask 31744
        %v379 = vsel %vm377, %v363, 0
        %v382 = vsel %vm377, %v364, 0
        %vm384 = vcmask 1043456
        %v386 = vsel %vm384, %v361, 0
        %v389 = vsel %vm384, %v362, 0
        %391 = vmatprep.subr.mxu0 %v389
        %392 = vmatpush1.msra.mxu0 %v386
        %393 = vmatprep.subr.mxu0 0.0
        %394 = vmatpush1.msra.mxu0 0.0
        %395 = vmatprep.subr.mxu0 0.0
        %396 = vmatpush1.msra.mxu0 0.0
        %397 = vmatprep.subr.mxu0 0.0
        %398 = vmatpush1.msra.mxu0 0.0
        %399 = vmatprep.subr.mxu0 0.0
        %400 = vmatpush1.msra.mxu0 0.0
        %401 = vmatprep.subr.mxu0 0.0
        %402 = vmatpush1.msra.mxu0 0.0
        %403 = vmatprep.subr.mxu0 0.0
        %404 = vmatpush1.msra.mxu0 0.0
        %405 = vmatprep.subr.mxu0 0.0
        %406 = vmatpush1.msra.mxu0 0.0
        %407 = vmatprep.subr.mxu0 0.0
        %408 = vmatpush1.msra.mxu0 0.0
        %409 = vmatprep.subr.mxu0 0.0
        %410 = vmatpush1.msra.mxu0 0.0
        %411 = vmatprep.subr.mxu0 0.0
        %412 = vmatpush1.msra.mxu0 0.0
        %413 = vmatprep.subr.mxu0 0.0
        %414 = vmatpush1.msra.mxu0 0.0
        %415 = vmatprep.subr.mxu0 0.0
        %416 = vmatpush1.msra.mxu0 0.0
        %417 = vmatprep.subr.mxu0 0.0
        %418 = vmatpush1.msra.mxu0 0.0
        %419 = vmatprep.subr.mxu0 0.0
        %420 = vmatpush1.msra.mxu0 0.0
        %421 = vmatprep.subr.mxu0 0.0
        %422 = vmatpush1.msra.mxu0 0.0
        %423 = vmatprep.subr.mxu0 0.0
        %424 = vmatpush1.msra.mxu0 0.0
        %425 = vmatprep.subr.mxu0 0.0
        %426 = vmatpush1.msra.mxu0 0.0
        %427 = vmatprep.subr.mxu0 0.0
        %428 = vmatpush1.msra.mxu0 0.0
        %429 = vmatprep.subr.mxu0 0.0
        %430 = vmatpush1.msra.mxu0 0.0
        %431 = vmatprep.subr.mxu0 0.0
        %432 = vmatpush1.msra.mxu0 0.0
        %433 = vmatprep.subr.mxu0 0.0
        %434 = vmatpush1.msra.mxu0 0.0
        %435 = vmatprep.subr.mxu0 0.0
        %436 = vmatpush1.msra.mxu0 0.0
        %437 = vmatprep.subr.mxu0 0.0
        %438 = vmatpush1.msra.mxu0 0.0
        %439 = vmatprep.subr.mxu0 0.0
        %440 = vmatpush1.msra.mxu0 0.0
        %441 = vmatprep.subr.mxu0 0.0
        %442 = vmatpush1.msra.mxu0 0.0
        %443 = vmatprep.subr.mxu0 0.0
        %444 = vmatpush1.msra.mxu0 0.0
        %445 = vmatprep.subr.mxu0 0.0
        %446 = vmatpush1.msra.mxu0 0.0
        %447 = vmatprep.subr.mxu0 0.0
        %448 = vmatpush1.msra.mxu0 0.0
        %449 = vmatprep.subr.mxu0 0.0
        %450 = vmatpush1.msra.mxu0 0.0
        %451 = vmatprep.subr.mxu0 0.0
        %452 = vmatpush1.msra.mxu0 0.0
        %453 = vmatprep.subr.mxu0 0.0
        %454 = vmatpush1.msra.mxu0 0.0
        %455 = vmatprep.mubr.f32.mxu0 0.0
        %456 = vmatmul.mubr.f32.gmra.mrb[0].mxu0 %v379
        %v457 = vpop.f32.mrb[0].mxu0
        %v458 = vadd.f32 %v370, %v457
        %v459 = vpop.f32.mrb[0].mxu0
        %v460 = vadd.f32 %v370, %v459
        %461 = vmatprep.mubr.f32.mxu0 0.0
        %462 = vmatmul.mubr.f32.gmra.mrb[0].mxu0 %v382
        %v463 = vpop.f32.mrb[0].mxu0
        %v464 = vadd.f32 %v375, %v463
        %v465 = vpop.f32.mrb[0].mxu0
        %v466 = vadd.f32 %v375, %v465
        %467 = vdwg.mxu0
        %v468 = vxor.u32 %v458, 2147483648
        %v469 = vxor.u32 %v460, 2147483648
        %v470 = vxor.u32 %v464, 2147483648
        %v471 = vxor.u32 %v466, 2147483648
        %v472 = vmul.f32 %v468, 1.442695
        %v473 = vpow.pop %v472
        %v474 = vmul.f32 %v469, 1.442695
        %v475 = vpow.pop %v474
        %v476 = vmul.f32 %v470, 1.442695
        %v477 = vpow.pop %v476
        %v478 = vmul.f32 %v471, 1.442695
        %v479 = vpow.pop %v478
        %v480 = vadd.f32 %v473, 1.0
        %v481 = vadd.f32 %v475, 1.0
        %v482 = vadd.f32 %v477, 1.0
        %v483 = vadd.f32 %v479, 1.0
        %v484 = vrcp.pop %v480
        %v485 = vmul.f32 1.0, %v484
        %v486 = vrcp.pop %v481
        %v487 = vmul.f32 1.0, %v486
        %v488 = vrcp.pop %v482
        %v489 = vmul.f32 1.0, %v488
        %v490 = vrcp.pop %v483
        %v491 = vmul.f32 1.0, %v490
        %v492 = vmul.f32 %v458, %v485
        %v493 = vmul.f32 %v460, %v487
        %v494 = vmul.f32 %v464, %v489
        %v495 = vmul.f32 %v466, %v491
        %v496 = vmul.f32 %v492, %v263
        %v497 = vmul.f32 %v493, %v264
        %v498 = vmul.f32 %v494, %v265
        %v499 = vmul.f32 %v495, %v266
        %500 = vst [vmem:[%s260] sm:$0xff] %v496
        %501 = vst [vmem:[%s260 + $0x8] sm:$0xff] %v497
        %502 = vst [vmem:[%s260 + $0x10] sm:$0xff] %v498
        %503 = vst [vmem:[%s260 + $0x18] sm:$0xff] %v499
        %s504 = sand.u32 %s156, 1
        %s505 = scalar_lea.sflag [#allocation4], %s504
        %s506 = sand.u32 %s156, 1
        %s507 = smul.addr %s506, 32
        %s508 = scalar_lea.vmem [#allocation5], %s507
        // Predicated region
        $region45: #{tpu_custom_call.1} parent=39 // pred_check
          %p509 = pneg %p166
        $region46: #{tpu_custom_call.1} parent=39 // pred_check_branch
          %511 = sbr.rel (%p509) target = $region48
        $region47: #{tpu_custom_call.1} parent=39 // pred_region
          %s512 = smul.u32 2, %s27
          %s514 = ssub.s32 512, 512
          %515 = vsyncadd %s505, %s514
          %s516 = smul.addr %s26, 4
          %s517 = sadd.s32 %s512, %s516
          %s518 = smul.addr %s517, 128
          %s519 = scalar_lea.hbm %s5, %s518
          %s520 = sshll.u32 %s508, 4
          %s521 = int_to_ptr.vmem [resolvable:$true] %s520
          %526 = dma.vmem_to_hbm [thread:$0]  %s521, 512, %s519, %s505, 256, 256, 16
        $region48: #{tpu_custom_call.1} parent=39 // pred_fallthru
          _
      $region40: #{tpu_custom_call.1} parent=5 // pred_fallthru
        _
      %p527 = scmp.le.s32.totalorder 2, %s17
      // Predicated region
      $region49: #{tpu_custom_call.1} parent=5 // pred_check
        %p528 = pneg %p527
      $region50: #{tpu_custom_call.1} parent=5 // pred_check_branch
        %530 = sbr.rel (%p528) target = $region52
      $region51: #{tpu_custom_call.1} parent=5 // pred_region
        %s531 = ssub.s32 %s17, 2
        // Predicated region
        $region53: #{tpu_custom_call.1} parent=51 // pred_check
          %p532 = pneg %p172
        $region54: #{tpu_custom_call.1} parent=51 // pred_check_branch
          %534 = sbr.rel (%p532) target = $region56
        $region55: #{tpu_custom_call.1} parent=51 // pred_region
          %s535 = sand.u32 %s157, 1
          %s536 = scalar_lea.sflag [#allocation4], %s535
          %s537 = sand.u32 %s157, 1
          %s538 = smul.addr %s537, 32
          %s539 = scalar_lea.vmem [#allocation5], %s538
          %540 = dma.done %s536, 512
        $region56: #{tpu_custom_call.1} parent=51 // pred_fallthru
          _
      $region52: #{tpu_custom_call.1} parent=5 // pred_fallthru
        _
    $region6: #{tpu_custom_call.1} parent=1 // loop_footer
      %s21 = sadd.s32 1, %s17
    $region7: #{tpu_custom_call.1} parent=1 // loop_footer_branch
      %16 = sbr.rel target = $region3
    $region8: #{tpu_custom_call.1} parent=1 // loop_exit
      _
    %541 = vsyncpa [#allocation3], 1
    %s542 = scalar_lea.sflag [#allocation3], 1
    %543 = vsyncpa %s542, 1
    %544 = vsyncpa [#allocation4], 1
    %s545 = scalar_lea.sflag [#allocation4], 1
    %546 = vsyncpa %s545, 1

</llo_original>
